<compile_context>
chip_gen: v7x
topology: tpu7x:2x2x1
jax: 0.10.0
libtpu: 0.0.40
codegen_flags: <defaults>
</compile_context>

<pallas_src>
import jax
import jax.numpy as jnp
from jax import lax
from jax.experimental import pallas as pl
from jax.experimental.pallas import tpu as pltpu


def gram_matrix_ref(x):
    """Plain-JAX reference / init-time target computation (B,C,H,W) -> (B,C,C)."""
    B, C, H, W = x.shape
    f = x.reshape(B, C, H * W).astype(jnp.float32)
    gm = jnp.einsum("bcn,bdn->bcd", f, f, preferred_element_type=jnp.float32)
    return gm / jnp.float32(C * H * W)


def _vmem_budget_bytes():
    """Generation-aware usable VMEM budget (3/4 of physical capacity).

    128 MiB (v5e/v6e) -> 96 MiB; 64 MiB (v7x) -> 48 MiB.  Conservative v7x
    default if the hardware query is unavailable.
    """
    cap = 64 * 1024 * 1024
    try:
        info = pltpu.get_tpu_info()
        cap = int(getattr(info, "vmem_capacity_bytes", cap))
    except Exception:
        pass
    return (cap // 4) * 3


def _pick_tile_n(n_per_split, C, itemsize, vmem_budget, max_tile_n=None):
    """Largest multiple-of-128 divisor of n_per_split whose double-buffered
    input tile (2 * C * TN * itemsize) plus the double-buffered (C, C) f32
    output block fits inside vmem_budget (with ~2 MiB headroom)."""
    reserve = 2 * C * C * 4 + (2 << 20)
    per_col = 2 * C * itemsize                      # double-buffered cost per N column
    tn_max = max((vmem_budget - reserve) // per_col, 128)
    tn_max = max((tn_max // 128) * 128, 128)
    if max_tile_n is not None:
        tn_max = min(tn_max, max((max_tile_n // 128) * 128, 128))
    if tn_max >= n_per_split:
        return n_per_split
    best, d = 128, 128
    while d <= tn_max:
        if n_per_split % d == 0:
            best = d
        d += 128
    return best


def style_loss_pallas(x, target_gram, *, max_tile_n=None):
    """StyleLoss.forward: returns (input_passthrough, scalar_mse_loss)."""
    B, C, H, W = x.shape
    N = H * W
    itemsize = x.dtype.itemsize

    # Split the N reduction across two cores when batch parallelism alone can't
    # feed both TCs (v7x).  Same total grid steps, so harmless on v5e/v6e.
    n_split = 2 if B == 1 else 1

    # Zero-pad N so every shape takes the tiled, pipelined path.  Zeros do not
    # change the gram; normalization below uses the ORIGINAL N.
    align = 128 * n_split
    n_pad = ((N + align - 1) // align) * align
    xf = x.reshape(B, C, N)
    if n_pad != N:
        xf = jnp.pad(xf, ((0, 0), (0, 0), (0, n_pad - N)))

    vmem_budget = _vmem_budget_bytes()
    n_per_split = n_pad // n_split
    TN = _pick_tile_n(n_per_split, C, itemsize, vmem_budget, max_tile_n)
    n_k = n_per_split // TN

    # bf16 MXU feed only in the compute-bound (large-C) regime; f32 accumulate.
    cast_bf16 = (x.dtype == jnp.float32) and (C >= 256)

    def kernel(x_ref, gm_ref):
        k = pl.program_id(2)

        @pl.when(k == 0)
        def _():
            gm_ref[...] = jnp.zeros_like(gm_ref)

        f = x_ref[0]                                # (C, TN), native dtype
        if cast_bf16:
            f = f.astype(jnp.bfloat16)
        # Pure MXU accumulate in the steady state: f @ f.T with f32 accumulation.
        gm_ref[0] = gm_ref[0] + lax.dot_general(
            f, f, (((1,), (1,)), ((), ())),
            preferred_element_type=jnp.float32,
        )

    partial_gm = pl.pallas_call(
        kernel,
        out_shape=jax.ShapeDtypeStruct((n_split * B, C, C), jnp.float32),
        grid_spec=pltpu.PrefetchScalarGridSpec(
            num_scalar_prefetch=0,
            grid=(n_split, B, n_k),
            in_specs=[
                pl.BlockSpec((1, C, TN), lambda s, b, k: (b, 0, s * n_k + k)),
            ],
            out_specs=pl.BlockSpec((1, C, C), lambda s, b, k: (s * B + b, 0, 0)),
        ),
        compiler_params=pltpu.CompilerParams(
            # split axis + batch axis parallel (megacore), N reduction arbitrary
            dimension_semantics=("parallel", "parallel", "arbitrary"),
            vmem_limit_bytes=vmem_budget,
        ),
        cost_estimate=pl.CostEstimate(
            flops=2 * B * C * C * n_pad,
            bytes_accessed=B * C * n_pad * itemsize + n_split * B * C * C * 4,
            transcendentals=0,
        ),
    )(xf)

    # Combine per-split partial grams, normalize by C*H*W (original N), MSE.
    gm = partial_gm.reshape(n_split, B, C, C).sum(axis=0) / jnp.float32(C * N)
    loss = jnp.mean((gm - target_gram.astype(jnp.float32)) ** 2)

    # StyleLoss.forward returns its input unchanged; loss is the side result.
    return x, loss


if __name__ == "__main__":
    key = jax.random.PRNGKey(0)

    # Case 1: small NCHW shapes, B > 1 (batch-parallel path).
    B, C, H, W = 2, 4, 16, 16
    k_in, k_tgt, key = jax.random.split(key, 3)
    target_feature = jax.random.normal(k_tgt, (B, C, H, W), dtype=jnp.float32)
    x = jax.random.normal(k_in, (B, C, H, W), dtype=jnp.float32)
    target_gram = gram_matrix_ref(target_feature)       # detached init-time target

    out, loss = style_loss_pallas(x, target_gram)
    out = jax.block_until_ready(out)
    loss = jax.block_until_ready(loss)

    gm_ref = gram_matrix_ref(x)
    loss_ref = jnp.mean((gm_ref - target_gram) ** 2)
    assert out.shape == x.shape and jnp.allclose(out, x), "forward must return input"
    assert jnp.allclose(loss, loss_ref, rtol=1e-5, atol=1e-6), "mse loss mismatch"

    # Case 2: B == 1 with a non-128-multiple spatial extent — exercises the
    # zero-padding path, the megacore reduction split, and multi-k accumulation
    # (max_tile_n=128 forces more than one reduction tile).
    B2, C2, H2, W2 = 1, 8, 20, 13
    k_in2, k_tgt2, key = jax.random.split(key, 3)
    tf2 = jax.random.normal(k_tgt2, (B2, C2, H2, W2), dtype=jnp.float32)
    x2 = jax.random.normal(k_in2, (B2, C2, H2, W2), dtype=jnp.float32)
    tg2 = gram_matrix_ref(tf2)

    out2, loss2 = style_loss_pallas(x2, tg2, max_tile_n=128)
    out2 = jax.block_until_ready(out2)
    loss2 = jax.block_until_ready(loss2)
    loss2_ref = jnp.mean((gram_matrix_ref(x2) - tg2) ** 2)
    assert jnp.allclose(out2, x2), "forward must return input (case 2)"
    assert jnp.allclose(loss2, loss2_ref, rtol=1e-5, atol=1e-6), "mse loss mismatch (case 2)"

    print("KERNEL_OK")
</pallas_src>

<mosaic_0001>
module attributes {stable_mosaic.version = 11 : i64} {
  func.func @kernel(%arg0: i32, %arg1: i32, %arg2: i32, %arg3: memref<1x4x256xf32, #tpu.memory_space<vmem>>, %arg4: memref<1x4x4xf32, #tpu.memory_space<vmem>>) attributes {dimension_semantics = [#tpu.dimension_semantics<parallel>, #tpu.dimension_semantics<parallel>, #tpu.dimension_semantics<arbitrary>], iteration_bounds = array<i64: 1, 2, 1>, scalar_prefetch = 0 : i64, scratch_operands = 0 : i64, tpu.core_type = #tpu.core_type<tc>, window_params = [{transform_indices = @transform_0, window_bounds = array<i64: 1, 4, 256>}, {transform_indices = @transform_1, window_bounds = array<i64: 1, 4, 4>}]} {
    %c0_i32 = arith.constant 0 : i32
    %0 = arith.cmpi eq, %arg2, %c0_i32 : i32
    %1 = arith.extui %0 : i1 to i32
    %c0_i32_0 = arith.constant 0 : i32
    %2 = arith.cmpi ne, %1, %c0_i32_0 : i32
    scf.if %2 {
      %cst_9 = arith.constant 0.000000e+00 : f32
      %12 = vector.broadcast %cst_9 : f32 to vector<1x4x4xf32>
      %c0_10 = arith.constant 0 : index
      %c0_11 = arith.constant 0 : index
      %c0_12 = arith.constant 0 : index
      %13 = vector.load %arg4[%c0_10, %c0_11, %c0_12] : memref<1x4x4xf32, #tpu.memory_space<vmem>>, vector<1x4x4xf32>
      tpu.vector_store %arg4[%c0_10, %c0_11, %c0_12], %12 {strides = array<i32>} : memref<1x4x4xf32, #tpu.memory_space<vmem>>, vector<1x4x4xf32>,
    } else {
    }
    %c0 = arith.constant 0 : index
    %c0_1 = arith.constant 0 : index
    %c0_2 = arith.constant 0 : index
    %3 = vector.load %arg3[%c0, %c0_1, %c0_2] : memref<1x4x256xf32, #tpu.memory_space<vmem>>, vector<1x4x256xf32>
    %4 = vector.shape_cast %3 : vector<1x4x256xf32> to vector<4x256xf32>
    %c0_3 = arith.constant 0 : index
    %c0_4 = arith.constant 0 : index
    %c0_5 = arith.constant 0 : index
    %5 = vector.load %arg4[%c0_3, %c0_4, %c0_5] : memref<1x4x4xf32, #tpu.memory_space<vmem>>, vector<1x4x4xf32>
    %6 = vector.shape_cast %5 : vector<1x4x4xf32> to vector<4x4xf32>
    %cst = arith.constant dense<0.000000e+00> : vector<4x4xf32>
    %7 = tpu.matmul %4, %4, %cst {dimension_numbers = #tpu.dot_dimension_numbers<[1], [1], [0], [0], [0, 0, 1, 0], [], []>} : vector<4x256xf32>, vector<4x256xf32>, vector<4x4xf32> -> vector<4x4xf32>
    %8 = arith.addf %6, %7 : vector<4x4xf32>
    %c0_6 = arith.constant 0 : index
    %c0_7 = arith.constant 0 : index
    %c0_8 = arith.constant 0 : index
    %9 = vector.load %arg4[%c0_6, %c0_7, %c0_8] : memref<1x4x4xf32, #tpu.memory_space<vmem>>, vector<1x4x4xf32>
    %10 = vector.shape_cast %9 : vector<1x4x4xf32> to vector<4x4xf32>
    %11 = vector.shape_cast %8 : vector<4x4xf32> to vector<1x4x4xf32>
    tpu.vector_store %arg4[%c0_6, %c0_7, %c0_8], %11 {strides = array<i32>} : memref<1x4x4xf32, #tpu.memory_space<vmem>>, vector<1x4x4xf32>,
    return
  }
  func.func @transform_0(%arg0: i32, %arg1: i32, %arg2: i32) -> (i32, i32, i32) {
    %c1_i32 = arith.constant 1 : i32
    %0 = arith.muli %arg0, %c1_i32 : i32
    %1 = arith.addi %0, %arg2 : i32
    %c0_i32 = arith.constant 0 : i32
    %c0_i32_0 = arith.constant 0 : i32
    return %arg1, %c0_i32, %1 : i32, i32, i32
  }
  func.func @transform_1(%arg0: i32, %arg1: i32, %arg2: i32) -> (i32, i32, i32) {
    %c2_i32 = arith.constant 2 : i32
    %0 = arith.muli %arg0, %c2_i32 : i32
    %1 = arith.addi %0, %arg1 : i32
    %c0_i32 = arith.constant 0 : i32
    %c0_i32_0 = arith.constant 0 : i32
    %c0_i32_1 = arith.constant 0 : i32
    return %1, %c0_i32, %c0_i32_0 : i32, i32, i32
  }
}

</mosaic_0001>

<llo_original>
// kernel: tpu_custom_call.1
$region0: #{tpu_custom_call.1}
  #allocation0 [shape = 'u32[]', space=smem, size = 0x4, offset = 0x4, fixed_abs, tag = 'smem constant byte address 0x4 - core index']
  #allocation1 [shape = 'u32[144,128]{1,0:T(1,128)}', space=vmem, size = 0x12000, scoped, tag = 'internal scratch']
  %s0 = inlined_call_operand.hbm [shape: f32[2,4,256], index: 0, kind: input, shape index: {}]
  %s1 = inlined_call_operand.hbm [shape: f32[2,4,4], index: 1, kind: output, shape index: {}]
  %s2 = sld [smem:[#allocation0]]
  $region45: #{tpu_custom_call.1} parent=0
    _
  %s4 = ssub.s32 1, %s2
  %s5 = scalar_select 0, %s4, %s2
  $region1: #{tpu_custom_call.1} parent=0
    #allocation2 [shape = 'u8[8192]{0}', space=vmem, size = 0x2000, scoped, tag = 'input window, operand 0']
    #allocation3 [shape = 's32[2]{0}', space=sflag, size = 0x8, scoped, tag = 'scoped memory for tpu_custom_call.1']
    #allocation4 [shape = 's32[2]{0}', space=sflag, size = 0x8, scoped, tag = 'scoped memory for tpu_custom_call.1']
    #allocation5 [shape = 'u8[4096]{0}', space=vmem, size = 0x1000, scoped, tag = 'output window, operand 0']
    %6 = vsyncpa [#allocation3], 0
    %s7 = scalar_lea.sflag [#allocation3], 1
    %8 = vsyncpa %s7, 0
    %9 = vsyncpa [#allocation4], 0
    %s10 = scalar_lea.sflag [#allocation4], 1
    %11 = vsyncpa %s10, 0
    loop: start=0, step=1, limit=4
    $region2: #{tpu_custom_call.1} parent=1 // loop_pre_header
      _
    $region3: #{tpu_custom_call.1} parent=1 // loop_header
      %s13 = sphi 0, %s17
      %p14 = scmp.ge.s32.totalorder %s13, 4
      %s20 = sphi 0, %s39
      %s21 = sphi 0, %s35
      %s22 = sphi 0, %s31
      %s23 = sphi 0, %s20
      %s24 = sphi 0, %s21
      %s25 = sphi 0, %s22
      %s26 = sphi 0, %s23
      %s27 = sphi 0, %s24
      %s28 = sphi 0, %s25
      %s46 = sphi 0, %s48
      %s49 = sphi 0, %s46
      %s50 = sphi 0, %s49
      %s66 = sphi 0, %s50
      %s76 = sphi 0, %s78
      %s79 = sphi 0, %s76
      %s80 = sphi 0, %s79
      %s96 = sphi 0, %s80
    $region4: #{tpu_custom_call.1} parent=1 // loop_header_branch
      %16 = sbr.rel (%p14) target = $region8
    $region5: #{tpu_custom_call.1} parent=1 // loop_body
      %s18 = ssub.s32 %s13, 1
      %s19 = ssub.s32 %s13, 2
      %s29 = sadd.s32 1, %s22
      %p30 = scmp.ge.s32.totalorder %s29, 1
      %s31 = scalar_select %p30, 0, %s29
      %s32 = sadd.s32 1, %s21
      %s33 = scalar_select %p30, %s32, %s21
      %p34 = scmp.ge.s32.totalorder %s33, 2
      %s35 = scalar_select %p34, 0, %s33
      %s36 = sadd.s32 1, %s20
      %s37 = scalar_select %p34, %s36, %s20
      %p38 = scmp.ge.s32.totalorder %s37, 1
      %s39 = scalar_select %p38, 0, %s37
      %s40 = sadd.s32 %s20, %s22
      %s41 = sadd.s32 %s39, %s31
      %s42 = ssub.s32 %s21, %s35
      %s43 = ssub.s32 %s40, %s41
      %s44 = sor.u32 %s42, %s43
      %p45 = scmp.eq.s32.totalorder %s44, 0
      %s47 = sadd.s32 %s46, 1
      %s48 = scalar_select %p45, %s46, %s47
      %p51 = pneg %p45
      %p52 = scmp.eq.s32.totalorder %s13, 1
      %p53 = por %p51, %p52
      %p54 = scmp.ne.s32.totalorder %s46, %s49
      %p55 = scmp.eq.s32.totalorder %s13, 0
      %p56 = por %p54, %p55
      %p57 = scmp.ne.s32.totalorder %s46, %s49
      %p58 = scmp.eq.s32.totalorder %s18, 1
      %p59 = por %p57, %p58
      %p60 = scmp.ne.s32.totalorder %s49, %s50
      %p61 = scmp.eq.s32.totalorder %s18, 0
      %p62 = por %p60, %p61
      %p63 = scmp.ne.s32.totalorder %s49, %s50
      %p64 = scmp.eq.s32.totalorder %s19, 1
      %p65 = por %p63, %p64
      %p67 = scmp.ne.s32.totalorder %s50, %s66
      %p68 = scmp.eq.s32.totalorder %s19, 0
      %p69 = por %p67, %p68
      %s70 = smul.u32 %s20, 2
      %s71 = sadd.s32 %s70, %s21
      %s72 = smul.u32 %s39, 2
      %s73 = sadd.s32 %s72, %s35
      %s74 = ssub.s32 %s71, %s73
      %p75 = scmp.eq.s32.totalorder %s74, 0
      %s77 = sadd.s32 %s76, 1
      %s78 = scalar_select %p75, %s76, %s77
      %p81 = pneg %p75
      %p82 = scmp.eq.s32.totalorder %s13, 1
      %p83 = por %p81, %p82
      %p84 = scmp.ne.s32.totalorder %s76, %s79
      %p85 = scmp.eq.s32.totalorder %s13, 0
      %p86 = por %p84, %p85
      %p87 = scmp.ne.s32.totalorder %s76, %s79
      %p88 = scmp.eq.s32.totalorder %s18, 1
      %p89 = por %p87, %p88
      %p90 = scmp.ne.s32.totalorder %s79, %s80
      %p91 = scmp.eq.s32.totalorder %s18, 0
      %p92 = por %p90, %p91
      %p93 = scmp.ne.s32.totalorder %s79, %s80
      %p94 = scmp.eq.s32.totalorder %s19, 1
      %p95 = por %p93, %p94
      %p97 = scmp.ne.s32.totalorder %s80, %s96
      %p98 = scmp.eq.s32.totalorder %s19, 0
      %p99 = por %p97, %p98
      %p100 = scmp.le.s32.totalorder 1, %s13
      %p101 = scmp.lt.s32.totalorder %s13, 3
      %p102 = pnand %p100, %p101
      %p103 = pneg %p102
      // Predicated region
      $region9: #{tpu_custom_call.1} parent=5 // pred_check
        _
      $region10: #{tpu_custom_call.1} parent=5 // pred_check_branch
        %105 = sbr.rel (%p102) target = $region12
      $region11: #{tpu_custom_call.1} parent=5 // pred_region
        %s106 = ssub.s32 %s13, 1
      $region12: #{tpu_custom_call.1} parent=5 // pred_fallthru
        _
      %p107 = scmp.lt.s32.totalorder %s13, 2
      // Predicated region
      $region13: #{tpu_custom_call.1} parent=5 // pred_check
        %p108 = pneg %p107
      $region14: #{tpu_custom_call.1} parent=5 // pred_check_branch
        %110 = sbr.rel (%p108) target = $region16
      $region15: #{tpu_custom_call.1} parent=5 // pred_region
        // Predicated region
        $region17: #{tpu_custom_call.1} parent=15 // pred_check
          %p111 = pneg %p56
        $region18: #{tpu_custom_call.1} parent=15 // pred_check_branch
          %113 = sbr.rel (%p111) target = $region20
        $region19: #{tpu_custom_call.1} parent=15 // pred_region
          %s114 = sand.u32 %s46, 1
          %s115 = scalar_lea.sflag [#allocation3], %s114
          %s116 = sand.u32 %s46, 1
          %s117 = smul.addr %s116, 8
          %s118 = scalar_lea.vmem [#allocation2], %s117
          %s119 = sadd.s32 %s20, %s22
          %s120 = smul.u32 2, %s119
          %s122 = ssub.s32 128, 128
          %123 = vsyncadd %s115, %s122
          %s124 = smul.addr %s21, 2
          %s125 = sadd.s32 %s120, %s124
          %s126 = smul.addr %s125, 64
          %s127 = scalar_lea.hbm %s0, %s126
          %s129 = sshll.u32 %s118, 4
          %s130 = int_to_ptr.vmem [resolvable:$true] %s129
          %132 = dma.hbm_to_vmem [thread:$0]  %s127, 128, %s130, %s115
        $region20: #{tpu_custom_call.1} parent=15 // pred_fallthru
          _
      $region16: #{tpu_custom_call.1} parent=5 // pred_fallthru
        _
      %p133 = scmp.le.s32.totalorder 1, %s13
      %p134 = scmp.lt.s32.totalorder %s13, 3
      %p135 = pnand %p133, %p134
      %p136 = pneg %p135
      // Predicated region
      $region21: #{tpu_custom_call.1} parent=5 // pred_check
        _
      $region22: #{tpu_custom_call.1} parent=5 // pred_check_branch
        %138 = sbr.rel (%p135) target = $region24
      $region23: #{tpu_custom_call.1} parent=5 // pred_region
        %s139 = ssub.s32 %s13, 1
        %s140 = sand.u32 %s49, 1
        %s141 = scalar_lea.sflag [#allocation3], %s140
        %s142 = sand.u32 %s49, 1
        %s143 = smul.addr %s142, 8
        %s144 = scalar_lea.vmem [#allocation2], %s143
        // Predicated region
        $region25: #{tpu_custom_call.1} parent=23 // pred_check
          %p145 = pneg %p62
        $region26: #{tpu_custom_call.1} parent=23 // pred_check_branch
          %147 = sbr.rel (%p145) target = $region28
        $region27: #{tpu_custom_call.1} parent=23 // pred_region
          %148 = dma.done %s141, 128
        $region28: #{tpu_custom_call.1} parent=23 // pred_fallthru
          _
        %s149 = sand.u32 %s49, 1
        %s150 = scalar_lea.sflag [#allocation3], %s149
        %s151 = sand.u32 %s49, 1
        %s152 = smul.addr %s151, 8
        %s153 = scalar_lea.vmem [#allocation2], %s152
        %p154 = pneg %p62
        %p155 = pneg %p59
        %p156 = pneg %p92
        %p157 = pneg %p89
        %s158 = sand.u32 %s79, 1
        %s159 = scalar_lea.sflag [#allocation4], %s158
        %s160 = sand.u32 %s79, 1
        %s161 = smul.addr %s160, 4
        %s162 = scalar_lea.vmem [#allocation5], %s161
        %s163 = sadd.s32 %s23, %s25
        %s164 = smul.u32 2, %s163
        %s165 = smul.u32 %s23, 2
        %s166 = sadd.s32 %s165, %s24
        %p167 = scmp.eq.s32.totalorder %s25, 0
        // Predicated region
        $region29: #{tpu_custom_call.1} parent=23 // pred_check
          %p168 = pneg %p167
        $region30: #{tpu_custom_call.1} parent=23 // pred_check_branch
          %170 = sbr.rel (%p168) target = $region32
        $region31: #{tpu_custom_call.1} parent=23 // pred_region
          %vm171 = vcmask 27648
          %172 = vst.msk [vmem:[%s162] sm:$0xf] %vm171, 0.0
        $region32: #{tpu_custom_call.1} parent=23 // pred_fallthru
          _
        %v173 = vld [vmem:[%s144] sm:$0xff]
        %v174 = vld [vmem:[%s162] sm:$0xf]
        %v176 = vcombine.high %v173, %v173
        %178 = vmatprep.subr.mxu0 %v176
        %179 = vmatpush1.xpose.msra.mxu0 %v173
        %180 = vmatprep.subr.mxu0 0.0
        %181 = vmatpush1.xpose.msra.mxu0 0.0
        %182 = vmatprep.subr.mxu0 0.0
        %183 = vmatpush1.xpose.msra.mxu0 0.0
        %184 = vmatprep.subr.mxu0 0.0
        %185 = vmatpush1.xpose.msra.mxu0 0.0
        %186 = vmatprep.subr.mxu0 0.0
        %187 = vmatpush1.xpose.msra.mxu0 0.0
        %188 = vmatprep.subr.mxu0 0.0
        %189 = vmatpush1.xpose.msra.mxu0 0.0
        %190 = vmatprep.subr.mxu0 0.0
        %191 = vmatpush1.xpose.msra.mxu0 0.0
        %192 = vmatprep.subr.mxu0 0.0
        %193 = vmatpush1.xpose.msra.mxu0 0.0
        %194 = vmatprep.subr.mxu0 0.0
        %195 = vmatpush1.xpose.msra.mxu0 0.0
        %196 = vmatprep.subr.mxu0 0.0
        %197 = vmatpush1.xpose.msra.mxu0 0.0
        %198 = vmatprep.subr.mxu0 0.0
        %199 = vmatpush1.xpose.msra.mxu0 0.0
        %200 = vmatprep.subr.mxu0 0.0
        %201 = vmatpush1.xpose.msra.mxu0 0.0
        %202 = vmatprep.subr.mxu0 0.0
        %203 = vmatpush1.xpose.msra.mxu0 0.0
        %204 = vmatprep.subr.mxu0 0.0
        %205 = vmatpush1.xpose.msra.mxu0 0.0
        %206 = vmatprep.subr.mxu0 0.0
        %207 = vmatpush1.xpose.msra.mxu0 0.0
        %208 = vmatprep.subr.mxu0 0.0
        %209 = vmatpush1.xpose.msra.mxu0 0.0
        %210 = vmatprep.subr.mxu0 0.0
        %211 = vmatpush1.xpose.msra.mxu0 0.0
        %212 = vmatprep.subr.mxu0 0.0
        %213 = vmatpush1.xpose.msra.mxu0 0.0
        %214 = vmatprep.subr.mxu0 0.0
        %215 = vmatpush1.xpose.msra.mxu0 0.0
        %216 = vmatprep.subr.mxu0 0.0
        %217 = vmatpush1.xpose.msra.mxu0 0.0
        %218 = vmatprep.subr.mxu0 0.0
        %219 = vmatpush1.xpose.msra.mxu0 0.0
        %220 = vmatprep.subr.mxu0 0.0
        %221 = vmatpush1.xpose.msra.mxu0 0.0
        %222 = vmatprep.subr.mxu0 0.0
        %223 = vmatpush1.xpose.msra.mxu0 0.0
        %224 = vmatprep.subr.mxu0 0.0
        %225 = vmatpush1.xpose.msra.mxu0 0.0
        %226 = vmatprep.subr.mxu0 0.0
        %227 = vmatpush1.xpose.msra.mxu0 0.0
        %228 = vmatprep.subr.mxu0 0.0
        %229 = vmatpush1.xpose.msra.mxu0 0.0
        %230 = vmatprep.subr.mxu0 0.0
        %231 = vmatpush1.xpose.msra.mxu0 0.0
        %232 = vmatprep.subr.mxu0 0.0
        %233 = vmatpush1.xpose.msra.mxu0 0.0
        %234 = vmatprep.subr.mxu0 0.0
        %235 = vmatpush1.xpose.msra.mxu0 0.0
        %236 = vmatprep.subr.mxu0 0.0
        %237 = vmatpush1.xpose.msra.mxu0 0.0
        %238 = vmatprep.subr.mxu0 0.0
        %239 = vmatpush1.xpose.msra.mxu0 0.0
        %240 = vmatprep.subr.mxu0 0.0
        %241 = vmatpush1.xpose.msra.mxu0 0.0
        %242 = vmatprep.mubr.f32.mxu0 %v176
        %243 = vmatmul.mubr.f32.gmra.mrb[0].mxu0 %v173
        %v244 = vpop.f32.mrb[0].mxu0
        %v245 = vadd.f32 0.0, %v244
        %v246 = vpop.f32.mrb[0].mxu0
        %247 = vdwg.mxu0
        %v248 = vadd.f32 %v174, %v245
        %vm249 = vcmask 27648
        %250 = vst.msk [vmem:[%s162] sm:$0xf] %vm249, %v248
        %s251 = sand.u32 %s79, 1
        %s252 = scalar_lea.sflag [#allocation4], %s251
        %s253 = sand.u32 %s79, 1
        %s254 = smul.addr %s253, 4
        %s255 = scalar_lea.vmem [#allocation5], %s254
        // Predicated region
        $region33: #{tpu_custom_call.1} parent=23 // pred_check
          %p256 = pneg %p89
        $region34: #{tpu_custom_call.1} parent=23 // pred_check_branch
          %258 = sbr.rel (%p256) target = $region36
        $region35: #{tpu_custom_call.1} parent=23 // pred_region
          %s259 = smul.u32 %s23, 2
          %s260 = sadd.s32 %s259, %s24
          %s262 = ssub.s32 64, 64
          %263 = vsyncadd %s252, %s262
          %s264 = smul.addr %s260, 64
          %s265 = scalar_lea.hbm %s1, %s264
          %s267 = sshll.u32 %s255, 4
          %s268 = int_to_ptr.vmem [resolvable:$true] %s267
          %270 = dma.vmem_to_hbm [thread:$0]  %s268, 64, %s265, %s252
        $region36: #{tpu_custom_call.1} parent=23 // pred_fallthru
          _
      $region24: #{tpu_custom_call.1} parent=5 // pred_fallthru
        _
      %p271 = scmp.le.s32.totalorder 2, %s13
      // Predicated region
      $region37: #{tpu_custom_call.1} parent=5 // pred_check
        %p272 = pneg %p271
      $region38: #{tpu_custom_call.1} parent=5 // pred_check_branch
        %274 = sbr.rel (%p272) target = $region40
      $region39: #{tpu_custom_call.1} parent=5 // pred_region
        %s275 = ssub.s32 %s13, 2
        // Predicated region
        $region41: #{tpu_custom_call.1} parent=39 // pred_check
          %p276 = pneg %p95
        $region42: #{tpu_custom_call.1} parent=39 // pred_check_branch
          %278 = sbr.rel (%p276) target = $region44
        $region43: #{tpu_custom_call.1} parent=39 // pred_region
          %s279 = sand.u32 %s80, 1
          %s280 = scalar_lea.sflag [#allocation4], %s279
          %s281 = sand.u32 %s80, 1
          %s282 = smul.addr %s281, 4
          %s283 = scalar_lea.vmem [#allocation5], %s282
          %284 = dma.done %s280, 64
        $region44: #{tpu_custom_call.1} parent=39 // pred_fallthru
          _
      $region40: #{tpu_custom_call.1} parent=5 // pred_fallthru
        _
    $region6: #{tpu_custom_call.1} parent=1 // loop_footer
      %s17 = sadd.s32 1, %s13
    $region7: #{tpu_custom_call.1} parent=1 // loop_footer_branch
      %12 = sbr.rel target = $region3
    $region8: #{tpu_custom_call.1} parent=1 // loop_exit
      _
    %285 = vsyncpa [#allocation3], 1
    %s286 = scalar_lea.sflag [#allocation3], 1
    %287 = vsyncpa %s286, 1
    %288 = vsyncpa [#allocation4], 1
    %s289 = scalar_lea.sflag [#allocation4], 1
    %290 = vsyncpa %s289, 1

</llo_original>
